<compile_context>
chip_gen: v6e
topology: v6e:2x2x1
jax: 0.10.0
libtpu: 0.0.40
codegen_flags: <defaults>
</compile_context>

<pallas_src>
import jax
import jax.numpy as jnp
from jax import lax
from jax.experimental import pallas as pl
from jax.experimental.pallas import tpu as pltpu

_LANE = 128
_DEFAULT_BLOCK_BYTES = 4 * 1024 * 1024   # f32-equivalent bytes per input per buffer
_FALLBACK_ELEMS = 4096                   # below this, pallas_call overhead dominates


def _round_up(x: int, m: int) -> int:
    return ((x + m - 1) // m) * m


def _two_tensorcores() -> bool:
    """True only on chips with 2 TensorCores sharing HBM (v7x)."""
    try:
        dev = jax.devices()[0]
        if dev.platform != "tpu":
            return False
        kind = dev.device_kind.lower()
    except Exception:
        return False
    return "7" in kind   # e.g. "TPU7x" / "TPU v7x"; v5e/v6e -> single TC


def _make_kernel(B, M, N, bb, rr, nb, nr, has_edge):
    """Kernel over blocks of shape (bb, rr, N) of the [B, M, N] inputs."""

    def kernel(f_ref, r_ref, o_ref, acc_ref):
        c = pl.program_id(0)     # TensorCore / core-split index
        ib = pl.program_id(1)    # batch-block index within this core
        ir = pl.program_id(2)    # row-block index
        step = ib * nr + ir

        @pl.when(step == 0)
        def _init():
            acc_ref[...] = jnp.zeros_like(acc_ref)

        # Elementwise diff + square in f32 (supported VALU path on v5e,
        # f32 accumulation precision everywhere).
        d = f_ref[...].astype(jnp.float32) - r_ref[...].astype(jnp.float32)
        sq = d * d

        if has_edge:
            b0 = (c * nb + ib) * bb      # logical (unclamped) batch offset
            r0 = ir * rr                  # row offset within the matrix
            full = jnp.logical_and(b0 + bb <= B, r0 + rr <= M)

            @pl.when(full)
            def _full_block():            # hot path: no masking work
                acc_ref[...] += jnp.sum(sq, axis=0)

            @pl.when(jnp.logical_not(full))
            def _edge_block():            # last partial block(s) only
                bmask = (b0 + lax.broadcasted_iota(jnp.int32, (bb, rr, N), 0)) < B
                rmask = (r0 + lax.broadcasted_iota(jnp.int32, (bb, rr, N), 1)) < M
                masked = jnp.where(jnp.logical_and(bmask, rmask), sq, 0.0)
                acc_ref[...] += jnp.sum(masked, axis=0)
        else:
            acc_ref[...] += jnp.sum(sq, axis=0)

        @pl.when(step == nb * nr - 1)
        def _finalize():
            # Single sublane (XLU) collapse at the very end; per-core output row.
            o_ref[...] = jnp.sum(acc_ref[...], axis=0, keepdims=True).reshape(1, 1, N)

    return kernel


def norm_loss(features: jax.Array, recon_features: jax.Array,
              *, block_bytes: int = _DEFAULT_BLOCK_BYTES) -> jax.Array:
    """Frobenius-norm-squared loss: sum((features - recon_features)**2).

    Args:
      features / recon_features: [batch, n_parcels, n_parcels] (any float dtype).
      block_bytes: f32-equivalent VMEM budget per input per pipeline buffer.
    Returns:
      scalar float32 loss.
    """
    assert features.shape == recon_features.shape
    total = features.size
    if total == 0:
        return jnp.zeros((), jnp.float32)

    # Tiny problem (or weird rank): a fused XLA reduction beats kernel launch cost.
    if total < _FALLBACK_ELEMS or features.ndim < 2:
        d = features.astype(jnp.float32) - recon_features.astype(jnp.float32)
        return jnp.sum(d * d)

    f, r = features, recon_features
    if f.ndim == 2:
        f, r = f[None], r[None]
    elif f.ndim > 3:
        new_shape = (-1,) + f.shape[-2:]
        f, r = f.reshape(new_shape), r.reshape(new_shape)

    B, M, N = f.shape
    itemsize = jnp.dtype(f.dtype).itemsize
    sub_tile = max(8, 32 // itemsize)          # 8 (f32) / 16 (bf16) / 32 (int8, fp8)
    n_lanes = _round_up(N, _LANE)              # VMEM lane padding of the last dim
    m_sub = _round_up(M, sub_tile)

    # Block = (bb, rr, N).  Budget is counted in f32-equivalent elements so the
    # in-kernel f32 temporaries stay bounded for sub-32-bit inputs too.
    budget_elems = max(1, block_bytes // 4)
    item_elems = m_sub * n_lanes               # one padded [M, N] matrix
    if item_elems <= budget_elems:
        rr = M                                  # full matrix rows per block
        bb = max(1, min(B, budget_elems // item_elems))
    else:
        bb = 1                                  # huge matrices: block over rows
        rr = max(sub_tile, (budget_elems // n_lanes) // sub_tile * sub_tile)
        if rr >= M:
            rr = M

    nbtot = pl.cdiv(B, bb)                     # total batch blocks
    nrtot = pl.cdiv(M, rr)                     # row blocks per matrix
    num_cores = 2 if (_two_tensorcores() and nbtot >= 2) else 1
    nb = pl.cdiv(nbtot, num_cores)             # batch blocks per core
    grid = (num_cores, nb, nrtot)

    # Only emit the masked edge path when some block can actually be partial.
    has_edge = (nbtot * bb != B) or (nrtot * rr != M) or (num_cores * nb != nbtot)

    def in_map(c, i, j):
        # Clamp fully-out-of-range logical blocks (uneven core split) to the last
        # real block; the in-kernel mask zeroes their contribution.
        bidx = jnp.minimum(c * nb + i, nbtot - 1)
        return (bidx, j, 0)

    in_spec = pl.BlockSpec((bb, rr, N), in_map)
    out_spec = pl.BlockSpec((1, 1, N), lambda c, i, j: (c, 0, 0))

    # VMEM budget: 2 inputs x 2 pipeline buffers + f32 temporaries + accumulator.
    blk_in = bb * _round_up(rr, sub_tile) * n_lanes * itemsize
    blk_f32 = bb * _round_up(rr, sub_tile) * n_lanes * 4
    acc_bytes = _round_up(rr, 8) * n_lanes * 4
    vmem_limit = 4 * blk_in + 5 * blk_f32 + 2 * acc_bytes + (4 << 20)
    vmem_limit = int(max(16 << 20, min(56 << 20, vmem_limit)))

    core_sem = pltpu.CORE_PARALLEL if num_cores > 1 else pltpu.ARBITRARY

    cost = pl.CostEstimate(
        flops=3 * total,
        transcendentals=0,
        bytes_accessed=2 * B * M * N * itemsize + num_cores * N * 4,
    )

    partials = pl.pallas_call(
        _make_kernel(B, M, N, bb, rr, nb, nrtot, has_edge),
        out_shape=jax.ShapeDtypeStruct((num_cores, 1, N), jnp.float32),
        grid=grid,
        in_specs=[in_spec, in_spec],
        out_specs=out_spec,
        scratch_shapes=[pltpu.VMEM((rr, N), jnp.float32)],
        compiler_params=pltpu.CompilerParams(
            dimension_semantics=(core_sem, pltpu.ARBITRARY, pltpu.ARBITRARY),
            vmem_limit_bytes=vmem_limit,
        ),
        cost_estimate=cost,
    )(f, r)

    # Tiny final lane/core reduction done by XLA.
    return jnp.sum(partials)


if __name__ == "__main__":
    key = jax.random.PRNGKey(0)

    def ref_loss(a, b):
        d = a.astype(jnp.float32) - b.astype(jnp.float32)
        return jnp.sum(d * d)

    # (shape, dtype, block_bytes override) -- small shapes; overrides exercise
    # the multi-block and masked-edge paths without needing huge inputs.
    cases = [
        ((2, 16, 16), jnp.float32, None),          # tiny -> pure-XLA fallback
        ((4, 64, 64), jnp.float32, None),          # single-block kernel path
        ((16, 192, 192), jnp.float32, None),       # lane-padded (192->256) path
        ((4, 64, 64), jnp.bfloat16, None),         # packed-dtype path
        ((7, 96, 96), jnp.float32, 128 * 1024),    # multi batch-block + masked tail
        ((2, 300, 300), jnp.float32, 256 * 1024),  # row blocking (bb=1) + masked rows
    ]
    for shape, dtype, blk in cases:
        key, k1, k2 = jax.random.split(key, 3)
        feats = jax.random.normal(k1, shape, dtype=jnp.float32).astype(dtype)
        recon = jax.random.normal(k2, shape, dtype=jnp.float32).astype(dtype)

        if blk is None:
            loss = norm_loss(feats, recon)
        else:
            loss = norm_loss(feats, recon, block_bytes=blk)
        jax.block_until_ready(loss)

        expected = ref_loss(feats, recon)
        assert jnp.allclose(loss, expected, rtol=1e-4, atol=1e-4), (
            shape, dtype, loss, expected)

    print("KERNEL_OK")
</pallas_src>

<mosaic_0001>
module attributes {stable_mosaic.version = 11 : i64} {
  func.func @kernel(%arg0: i32, %arg1: i32, %arg2: i32, %arg3: memref<4x64x64xf32, #tpu.memory_space<vmem>>, %arg4: memref<4x64x64xf32, #tpu.memory_space<vmem>>, %arg5: memref<1x1x64xf32, #tpu.memory_space<vmem>>, %arg6: memref<64x64xf32, #tpu.memory_space<vmem>>) attributes {dimension_semantics = [#tpu.dimension_semantics<arbitrary>, #tpu.dimension_semantics<arbitrary>, #tpu.dimension_semantics<arbitrary>], iteration_bounds = array<i64: 1, 1, 1>, scalar_prefetch = 0 : i64, scratch_operands = 1 : i64, tpu.core_type = #tpu.core_type<tc>, window_params = [{transform_indices = @transform_0, window_bounds = array<i64: 4, 64, 64>}, {transform_indices = @transform_1, window_bounds = array<i64: 4, 64, 64>}, {transform_indices = @transform_2, window_bounds = array<i64: 1, 1, 64>}]} {
    %c1_i32 = arith.constant 1 : i32
    %0 = arith.muli %arg1, %c1_i32 : i32
    %1 = arith.addi %0, %arg2 : i32
    %c0_i32 = arith.constant 0 : i32
    %2 = arith.cmpi eq, %1, %c0_i32 : i32
    %3 = arith.extui %2 : i1 to i32
    %c0_i32_0 = arith.constant 0 : i32
    %4 = arith.cmpi ne, %3, %c0_i32_0 : i32
    scf.if %4 {
      %cst_12 = arith.constant 0.000000e+00 : f32
      %16 = vector.broadcast %cst_12 : f32 to vector<64x64xf32>
      %c0_13 = arith.constant 0 : index
      %c0_14 = arith.constant 0 : index
      %17 = vector.load %arg6[%c0_13, %c0_14] : memref<64x64xf32, #tpu.memory_space<vmem>>, vector<64x64xf32>
      tpu.vector_store %arg6[%c0_13, %c0_14], %16 {strides = array<i32>} : memref<64x64xf32, #tpu.memory_space<vmem>>, vector<64x64xf32>,
    } else {
    }
    %c0 = arith.constant 0 : index
    %c0_1 = arith.constant 0 : index
    %c0_2 = arith.constant 0 : index
    %5 = vector.load %arg3[%c0, %c0_1, %c0_2] : memref<4x64x64xf32, #tpu.memory_space<vmem>>, vector<4x64x64xf32>
    %c0_3 = arith.constant 0 : index
    %c0_4 = arith.constant 0 : index
    %c0_5 = arith.constant 0 : index
    %6 = vector.load %arg4[%c0_3, %c0_4, %c0_5] : memref<4x64x64xf32, #tpu.memory_space<vmem>>, vector<4x64x64xf32>
    %7 = arith.subf %5, %6 : vector<4x64x64xf32>
    %8 = arith.mulf %7, %7 : vector<4x64x64xf32>
    %c0_6 = arith.constant 0 : index
    %c0_7 = arith.constant 0 : index
    %9 = vector.load %arg6[%c0_6, %c0_7] : memref<64x64xf32, #tpu.memory_space<vmem>>, vector<64x64xf32>
    %cst = arith.constant dense<0.000000e+00> : vector<64x64xf32>
    %10 = vector.multi_reduction <add>, %8, %cst [0] : vector<4x64x64xf32> to vector<64x64xf32>
    %11 = arith.addf %9, %10 : vector<64x64xf32>
    %c0_8 = arith.constant 0 : index
    %c0_9 = arith.constant 0 : index
    %12 = vector.load %arg6[%c0_8, %c0_9] : memref<64x64xf32, #tpu.memory_space<vmem>>, vector<64x64xf32>
    tpu.vector_store %arg6[%c0_8, %c0_9], %11 {strides = array<i32>} : memref<64x64xf32, #tpu.memory_space<vmem>>, vector<64x64xf32>,
    %c0_i32_10 = arith.constant 0 : i32
    %13 = arith.cmpi eq, %1, %c0_i32_10 : i32
    %14 = arith.extui %13 : i1 to i32
    %c0_i32_11 = arith.constant 0 : i32
    %15 = arith.cmpi ne, %14, %c0_i32_11 : i32
    scf.if %15 {
      %c0_12 = arith.constant 0 : index
      %c0_13 = arith.constant 0 : index
      %16 = vector.load %arg6[%c0_12, %c0_13] : memref<64x64xf32, #tpu.memory_space<vmem>>, vector<64x64xf32>
      %cst_14 = arith.constant dense<0.000000e+00> : vector<64xf32>
      %17 = vector.multi_reduction <add>, %16, %cst_14 [0] : vector<64x64xf32> to vector<64xf32>
      %18 = vector.shape_cast %17 : vector<64xf32> to vector<1x64xf32>
      %19 = vector.shape_cast %18 : vector<1x64xf32> to vector<1x1x64xf32>
      %c0_15 = arith.constant 0 : index
      %c0_16 = arith.constant 0 : index
      %c0_17 = arith.constant 0 : index
      %20 = vector.load %arg5[%c0_15, %c0_16, %c0_17] : memref<1x1x64xf32, #tpu.memory_space<vmem>>, vector<1x1x64xf32>
      tpu.vector_store %arg5[%c0_15, %c0_16, %c0_17], %19 {strides = array<i32>} : memref<1x1x64xf32, #tpu.memory_space<vmem>>, vector<1x1x64xf32>,
    } else {
    }
    return
  }
  func.func @transform_0(%arg0: i32, %arg1: i32, %arg2: i32) -> (i32, i32, i32) {
    %c1_i32 = arith.constant 1 : i32
    %0 = arith.muli %arg0, %c1_i32 : i32
    %1 = arith.addi %0, %arg1 : i32
    %c0_i32 = arith.constant 0 : i32
    %2 = arith.minsi %1, %c0_i32 : i32
    %c0_i32_0 = arith.constant 0 : i32
    %c0_i32_1 = arith.constant 0 : i32
    return %2, %arg2, %c0_i32_0 : i32, i32, i32
  }
  func.func @transform_1(%arg0: i32, %arg1: i32, %arg2: i32) -> (i32, i32, i32) {
    %c1_i32 = arith.constant 1 : i32
    %0 = arith.muli %arg0, %c1_i32 : i32
    %1 = arith.addi %0, %arg1 : i32
    %c0_i32 = arith.constant 0 : i32
    %2 = arith.minsi %1, %c0_i32 : i32
    %c0_i32_0 = arith.constant 0 : i32
    %c0_i32_1 = arith.constant 0 : i32
    return %2, %arg2, %c0_i32_0 : i32, i32, i32
  }
  func.func @transform_2(%arg0: i32, %arg1: i32, %arg2: i32) -> (i32, i32, i32) {
    %c0_i32 = arith.constant 0 : i32
    %c0_i32_0 = arith.constant 0 : i32
    %c0_i32_1 = arith.constant 0 : i32
    return %arg0, %c0_i32, %c0_i32_0 : i32, i32, i32
  }
}

</mosaic_0001>

<llo_original>
// kernel: tpu_custom_call.1
$region0: #{tpu_custom_call.1}
  #allocation0 [shape = 'u32[]', space=smem, size = 0x4, offset = 0x4, fixed_abs, tag = 'smem constant byte address 0x4 - core index']
  #allocation1 [shape = 'u32[144,128]{1,0:T(1,128)}', space=vmem, size = 0x12000, scoped, tag = 'internal scratch']
  #allocation2 [shape = 'f32[64,64]{1,0:T(8,128)}', space=vmem, size = 0x8000, scoped, tag = 'scratch operand']
  %s0 = inlined_call_operand.hbm [shape: f32[4,64,64], index: 0, kind: input, shape index: {}]
  %s1 = inlined_call_operand.hbm [shape: f32[4,64,64], index: 1, kind: input, shape index: {}]
  %s2 = inlined_call_operand.hbm [shape: f32[1,1,64], index: 2, kind: output, shape index: {}]
  %s3 = sld [smem:[#allocation0]]
  $region34: #{tpu_custom_call.1} parent=0
    _
  %s5 = ssub.s32 1, %s3
  %s6 = scalar_select 0, %s5, %s3
  $region1: #{tpu_custom_call.1} parent=0
    #allocation3 [shape = 'u8[131072]{0}', space=vmem, size = 0x20000, scoped, tag = 'input window, operand 0, single buffered']
    #allocation4 [shape = 's32[1]{0}', space=sflag, size = 0x4, scoped, tag = 'scoped memory for tpu_custom_call.1']
    #allocation5 [shape = 's32[1]{0}', space=sflag, size = 0x4, scoped, tag = 'scoped memory for tpu_custom_call.1']
    #allocation6 [shape = 'u8[131072]{0}', space=vmem, size = 0x20000, scoped, tag = 'input window, operand 1, single buffered']
    #allocation7 [shape = 's32[1]{0}', space=sflag, size = 0x4, scoped, tag = 'scoped memory for tpu_custom_call.1']
    #allocation8 [shape = 'u8[512]{0}', space=vmem, size = 0x400, scoped, tag = 'output window, operand 0, single buffered']
    %7 = vsyncpa [#allocation4], 0
    %8 = vsyncpa [#allocation7], 0
    %9 = vsyncpa [#allocation5], 0
    // Predicated region
    $region2: #{tpu_custom_call.1} parent=1 // pred_check
      _
    $region3: #{tpu_custom_call.1} parent=1 // pred_check_branch
      %11 = sbr.rel (0) target = $region5
    $region4: #{tpu_custom_call.1} parent=1 // pred_region
      %s12 = sadd.s32 0, 0
      %p13 = scmp.lt.s32.totalorder %s12, 0
      %s14 = scalar_select %p13, %s12, 0
      %s15 = smul.u32 4, %s14
      %s17 = ssub.s32 4096, 4096
      %18 = vsyncadd [#allocation4], %s17
      %s19 = smul.addr %s15, 8
      %s20 = smul.addr %s19, 128
      %s21 = scalar_lea.hbm %s0, %s20
      %s22 = sshll.u32 [#allocation3], 4
      %s23 = int_to_ptr.vmem [resolvable:$true] %s22
      %28 = dma.hbm_to_vmem [thread:$0]  %s21, 4096, %s23, [#allocation4], 128, 128, 8
    $region5: #{tpu_custom_call.1} parent=1 // pred_fallthru
      _
    // Predicated region
    $region6: #{tpu_custom_call.1} parent=1 // pred_check
      _
    $region7: #{tpu_custom_call.1} parent=1 // pred_check_branch
      %30 = sbr.rel (0) target = $region9
    $region8: #{tpu_custom_call.1} parent=1 // pred_region
      %s31 = sadd.s32 0, 0
      %p32 = scmp.lt.s32.totalorder %s31, 0
      %s33 = scalar_select %p32, %s31, 0
      %s34 = smul.u32 4, %s33
      %s36 = ssub.s32 4096, 4096
      %37 = vsyncadd [#allocation7], %s36
      %s38 = smul.addr %s34, 8
      %s39 = smul.addr %s38, 128
      %s40 = scalar_lea.hbm %s1, %s39
      %s41 = sshll.u32 [#allocation6], 4
      %s42 = int_to_ptr.vmem [resolvable:$true] %s41
      %47 = dma.hbm_to_vmem [thread:$0]  %s40, 4096, %s42, [#allocation7], 128, 128, 8
    $region9: #{tpu_custom_call.1} parent=1 // pred_fallthru
      _
    // Predicated region
    $region10: #{tpu_custom_call.1} parent=1 // pred_check
      _
    $region11: #{tpu_custom_call.1} parent=1 // pred_check_branch
      %49 = sbr.rel (0) target = $region13
    $region12: #{tpu_custom_call.1} parent=1 // pred_region
      %50 = dma.done [#allocation4], 4096
    $region13: #{tpu_custom_call.1} parent=1 // pred_fallthru
      _
    // Predicated region
    $region14: #{tpu_custom_call.1} parent=1 // pred_check
      _
    $region15: #{tpu_custom_call.1} parent=1 // pred_check_branch
      %52 = sbr.rel (0) target = $region17
    $region16: #{tpu_custom_call.1} parent=1 // pred_region
      %53 = dma.done [#allocation7], 4096
    $region17: #{tpu_custom_call.1} parent=1 // pred_fallthru
      _
    %s54 = sadd.s32 0, 0
    %p55 = scmp.lt.s32.totalorder %s54, 0
    %s56 = scalar_select %p55, %s54, 0
    %s57 = smul.u32 4, %s56
    %s58 = sadd.s32 0, 0
    %p59 = scmp.lt.s32.totalorder %s58, 0
    %s60 = scalar_select %p59, %s58, 0
    %s61 = smul.u32 4, %s60
    %s62 = sadd.s32 0, 0
    %p63 = scmp.eq.s32.totalorder %s62, 0
    // Predicated region
    $region18: #{tpu_custom_call.1} parent=1 // pred_check
      %p64 = pneg %p63
    $region19: #{tpu_custom_call.1} parent=1 // pred_check_branch
      %66 = sbr.rel (%p64) target = $region21
    $region20: #{tpu_custom_call.1} parent=1 // pred_region
      %vm67 = vcmask 523264
      %68 = vst.msk [vmem:[#allocation2] sm:$0xff] %vm67, 0.0
      %69 = vst.msk [vmem:[#allocation2 + $0x8] sm:$0xff] %vm67, 0.0
      %70 = vst.msk [vmem:[#allocation2 + $0x10] sm:$0xff] %vm67, 0.0
      %71 = vst.msk [vmem:[#allocation2 + $0x18] sm:$0xff] %vm67, 0.0
      %72 = vst.msk [vmem:[#allocation2 + $0x20] sm:$0xff] %vm67, 0.0
      %73 = vst.msk [vmem:[#allocation2 + $0x28] sm:$0xff] %vm67, 0.0
      %74 = vst.msk [vmem:[#allocation2 + $0x30] sm:$0xff] %vm67, 0.0
      %75 = vst.msk [vmem:[#allocation2 + $0x38] sm:$0xff] %vm67, 0.0
    $region21: #{tpu_custom_call.1} parent=1 // pred_fallthru
      _
    %v76 = vld [vmem:[#allocation3] sm:$0xff]
    %v77 = vld [vmem:[#allocation3 + $0x8] sm:$0xff]
    %v78 = vld [vmem:[#allocation3 + $0x10] sm:$0xff]
    %v79 = vld [vmem:[#allocation3 + $0x18] sm:$0xff]
    %v80 = vld [vmem:[#allocation3 + $0x20] sm:$0xff]
    %v81 = vld [vmem:[#allocation3 + $0x28] sm:$0xff]
    %v82 = vld [vmem:[#allocation3 + $0x30] sm:$0xff]
    %v83 = vld [vmem:[#allocation3 + $0x38] sm:$0xff]
    %v84 = vld [vmem:[#allocation3 + $0x40] sm:$0xff]
    %v85 = vld [vmem:[#allocation3 + $0x48] sm:$0xff]
    %v86 = vld [vmem:[#allocation3 + $0x50] sm:$0xff]
    %v87 = vld [vmem:[#allocation3 + $0x58] sm:$0xff]
    %v88 = vld [vmem:[#allocation3 + $0x60] sm:$0xff]
    %v89 = vld [vmem:[#allocation3 + $0x68] sm:$0xff]
    %v90 = vld [vmem:[#allocation3 + $0x70] sm:$0xff]
    %v91 = vld [vmem:[#allocation3 + $0x78] sm:$0xff]
    %v92 = vld [vmem:[#allocation3 + $0x80] sm:$0xff]
    %v93 = vld [vmem:[#allocation3 + $0x88] sm:$0xff]
    %v94 = vld [vmem:[#allocation3 + $0x90] sm:$0xff]
    %v95 = vld [vmem:[#allocation3 + $0x98] sm:$0xff]
    %v96 = vld [vmem:[#allocation3 + $0xa0] sm:$0xff]
    %v97 = vld [vmem:[#allocation3 + $0xa8] sm:$0xff]
    %v98 = vld [vmem:[#allocation3 + $0xb0] sm:$0xff]
    %v99 = vld [vmem:[#allocation3 + $0xb8] sm:$0xff]
    %v100 = vld [vmem:[#allocation3 + $0xc0] sm:$0xff]
    %v101 = vld [vmem:[#allocation3 + $0xc8] sm:$0xff]
    %v102 = vld [vmem:[#allocation3 + $0xd0] sm:$0xff]
    %v103 = vld [vmem:[#allocation3 + $0xd8] sm:$0xff]
    %v104 = vld [vmem:[#allocation3 + $0xe0] sm:$0xff]
    %v105 = vld [vmem:[#allocation3 + $0xe8] sm:$0xff]
    %v106 = vld [vmem:[#allocation3 + $0xf0] sm:$0xff]
    %v107 = vld [vmem:[#allocation3 + $0xf8] sm:$0xff]
    %v108 = vld [vmem:[#allocation6] sm:$0xff]
    %v109 = vld [vmem:[#allocation6 + $0x8] sm:$0xff]
    %v110 = vld [vmem:[#allocation6 + $0x10] sm:$0xff]
    %v111 = vld [vmem:[#allocation6 + $0x18] sm:$0xff]
    %v112 = vld [vmem:[#allocation6 + $0x20] sm:$0xff]
    %v113 = vld [vmem:[#allocation6 + $0x28] sm:$0xff]
    %v114 = vld [vmem:[#allocation6 + $0x30] sm:$0xff]
    %v115 = vld [vmem:[#allocation6 + $0x38] sm:$0xff]
    %v116 = vld [vmem:[#allocation6 + $0x40] sm:$0xff]
    %v117 = vld [vmem:[#allocation6 + $0x48] sm:$0xff]
    %v118 = vld [vmem:[#allocation6 + $0x50] sm:$0xff]
    %v119 = vld [vmem:[#allocation6 + $0x58] sm:$0xff]
    %v120 = vld [vmem:[#allocation6 + $0x60] sm:$0xff]
    %v121 = vld [vmem:[#allocation6 + $0x68] sm:$0xff]
    %v122 = vld [vmem:[#allocation6 + $0x70] sm:$0xff]
    %v123 = vld [vmem:[#allocation6 + $0x78] sm:$0xff]
    %v124 = vld [vmem:[#allocation6 + $0x80] sm:$0xff]
    %v125 = vld [vmem:[#allocation6 + $0x88] sm:$0xff]
    %v126 = vld [vmem:[#allocation6 + $0x90] sm:$0xff]
    %v127 = vld [vmem:[#allocation6 + $0x98] sm:$0xff]
    %v128 = vld [vmem:[#allocation6 + $0xa0] sm:$0xff]
    %v129 = vld [vmem:[#allocation6 + $0xa8] sm:$0xff]
    %v130 = vld [vmem:[#allocation6 + $0xb0] sm:$0xff]
    %v131 = vld [vmem:[#allocation6 + $0xb8] sm:$0xff]
    %v132 = vld [vmem:[#allocation6 + $0xc0] sm:$0xff]
    %v133 = vld [vmem:[#allocation6 + $0xc8] sm:$0xff]
    %v134 = vld [vmem:[#allocation6 + $0xd0] sm:$0xff]
    %v135 = vld [vmem:[#allocation6 + $0xd8] sm:$0xff]
    %v136 = vld [vmem:[#allocation6 + $0xe0] sm:$0xff]
    %v137 = vld [vmem:[#allocation6 + $0xe8] sm:$0xff]
    %v138 = vld [vmem:[#allocation6 + $0xf0] sm:$0xff]
    %v139 = vld [vmem:[#allocation6 + $0xf8] sm:$0xff]
    %v140 = vsub.f32 %v76, %v108
    %v141 = vsub.f32 %v77, %v109
    %v142 = vsub.f32 %v78, %v110
    %v143 = vsub.f32 %v79, %v111
    %v144 = vsub.f32 %v80, %v112
    %v145 = vsub.f32 %v81, %v113
    %v146 = vsub.f32 %v82, %v114
    %v147 = vsub.f32 %v83, %v115
    %v148 = vsub.f32 %v84, %v116
    %v149 = vsub.f32 %v85, %v117
    %v150 = vsub.f32 %v86, %v118
    %v151 = vsub.f32 %v87, %v119
    %v152 = vsub.f32 %v88, %v120
    %v153 = vsub.f32 %v89, %v121
    %v154 = vsub.f32 %v90, %v122
    %v155 = vsub.f32 %v91, %v123
    %v156 = vsub.f32 %v92, %v124
    %v157 = vsub.f32 %v93, %v125
    %v158 = vsub.f32 %v94, %v126
    %v159 = vsub.f32 %v95, %v127
    %v160 = vsub.f32 %v96, %v128
    %v161 = vsub.f32 %v97, %v129
    %v162 = vsub.f32 %v98, %v130
    %v163 = vsub.f32 %v99, %v131
    %v164 = vsub.f32 %v100, %v132
    %v165 = vsub.f32 %v101, %v133
    %v166 = vsub.f32 %v102, %v134
    %v167 = vsub.f32 %v103, %v135
    %v168 = vsub.f32 %v104, %v136
    %v169 = vsub.f32 %v105, %v137
    %v170 = vsub.f32 %v106, %v138
    %v171 = vsub.f32 %v107, %v139
    %v172 = vmul.f32 %v140, %v140
    %v173 = vmul.f32 %v141, %v141
    %v174 = vmul.f32 %v142, %v142
    %v175 = vmul.f32 %v143, %v143
    %v176 = vmul.f32 %v144, %v144
    %v177 = vmul.f32 %v145, %v145
    %v178 = vmul.f32 %v146, %v146
    %v179 = vmul.f32 %v147, %v147
    %v180 = vmul.f32 %v148, %v148
    %v181 = vmul.f32 %v149, %v149
    %v182 = vmul.f32 %v150, %v150
    %v183 = vmul.f32 %v151, %v151
    %v184 = vmul.f32 %v152, %v152
    %v185 = vmul.f32 %v153, %v153
    %v186 = vmul.f32 %v154, %v154
    %v187 = vmul.f32 %v155, %v155
    %v188 = vmul.f32 %v156, %v156
    %v189 = vmul.f32 %v157, %v157
    %v190 = vmul.f32 %v158, %v158
    %v191 = vmul.f32 %v159, %v159
    %v192 = vmul.f32 %v160, %v160
    %v193 = vmul.f32 %v161, %v161
    %v194 = vmul.f32 %v162, %v162
    %v195 = vmul.f32 %v163, %v163
    %v196 = vmul.f32 %v164, %v164
    %v197 = vmul.f32 %v165, %v165
    %v198 = vmul.f32 %v166, %v166
    %v199 = vmul.f32 %v167, %v167
    %v200 = vmul.f32 %v168, %v168
    %v201 = vmul.f32 %v169, %v169
    %v202 = vmul.f32 %v170, %v170
    %v203 = vmul.f32 %v171, %v171
    %v204 = vld [vmem:[#allocation2] sm:$0xff]
    %v205 = vld [vmem:[#allocation2 + $0x8] sm:$0xff]
    %v206 = vld [vmem:[#allocation2 + $0x10] sm:$0xff]
    %v207 = vld [vmem:[#allocation2 + $0x18] sm:$0xff]
    %v208 = vld [vmem:[#allocation2 + $0x20] sm:$0xff]
    %v209 = vld [vmem:[#allocation2 + $0x28] sm:$0xff]
    %v210 = vld [vmem:[#allocation2 + $0x30] sm:$0xff]
    %v211 = vld [vmem:[#allocation2 + $0x38] sm:$0xff]
    %vm212 = vcmask 523264
    %v213 = vsel %vm212, %v172, 0.0
    %v214 = vsel %vm212, %v180, 0.0
    %v215 = vadd.f32 %v213, %v214
    %v216 = vsel %vm212, %v188, 0.0
    %v217 = vadd.f32 %v215, %v216
    %v218 = vsel %vm212, %v196, 0.0
    %v219 = vadd.f32 %v217, %v218
    %v220 = vsel %vm212, %v173, 0.0
    %v221 = vsel %vm212, %v181, 0.0
    %v222 = vadd.f32 %v220, %v221
    %v223 = vsel %vm212, %v189, 0.0
    %v224 = vadd.f32 %v222, %v223
    %v225 = vsel %vm212, %v197, 0.0
    %v226 = vadd.f32 %v224, %v225
    %v227 = vsel %vm212, %v174, 0.0
    %v228 = vsel %vm212, %v182, 0.0
    %v229 = vadd.f32 %v227, %v228
    %v230 = vsel %vm212, %v190, 0.0
    %v231 = vadd.f32 %v229, %v230
    %v232 = vsel %vm212, %v198, 0.0
    %v233 = vadd.f32 %v231, %v232
    %v234 = vsel %vm212, %v175, 0.0
    %v235 = vsel %vm212, %v183, 0.0
    %v236 = vadd.f32 %v234, %v235
    %v237 = vsel %vm212, %v191, 0.0
    %v238 = vadd.f32 %v236, %v237
    %v239 = vsel %vm212, %v199, 0.0
    %v240 = vadd.f32 %v238, %v239
    %v241 = vsel %vm212, %v176, 0.0
    %v242 = vsel %vm212, %v184, 0.0
    %v243 = vadd.f32 %v241, %v242
    %v244 = vsel %vm212, %v192, 0.0
    %v245 = vadd.f32 %v243, %v244
    %v246 = vsel %vm212, %v200, 0.0
    %v247 = vadd.f32 %v245, %v246
    %v248 = vsel %vm212, %v177, 0.0
    %v249 = vsel %vm212, %v185, 0.0
    %v250 = vadd.f32 %v248, %v249
    %v251 = vsel %vm212, %v193, 0.0
    %v252 = vadd.f32 %v250, %v251
    %v253 = vsel %vm212, %v201, 0.0
    %v254 = vadd.f32 %v252, %v253
    %v255 = vsel %vm212, %v178, 0.0
    %v256 = vsel %vm212, %v186, 0.0
    %v257 = vadd.f32 %v255, %v256
    %v258 = vsel %vm212, %v194, 0.0
    %v259 = vadd.f32 %v257, %v258
    %v260 = vsel %vm212, %v202, 0.0
    %v261 = vadd.f32 %v259, %v260
    %v262 = vsel %vm212, %v179, 0.0
    %v263 = vsel %vm212, %v187, 0.0
    %v264 = vadd.f32 %v262, %v263
    %v265 = vsel %vm212, %v195, 0.0
    %v266 = vadd.f32 %v264, %v265
    %v267 = vsel %vm212, %v203, 0.0
    %v268 = vadd.f32 %v266, %v267
    %v269 = vadd.f32 %v204, %v219
    %v270 = vadd.f32 %v205, %v226
    %v271 = vadd.f32 %v206, %v233
    %v272 = vadd.f32 %v207, %v240
    %v273 = vadd.f32 %v208, %v247
    %v274 = vadd.f32 %v209, %v254
    %v275 = vadd.f32 %v210, %v261
    %v276 = vadd.f32 %v211, %v268
    %277 = vst.msk [vmem:[#allocation2] sm:$0xff] %vm212, %v269
    %278 = vst.msk [vmem:[#allocation2 + $0x8] sm:$0xff] %vm212, %v270
    %279 = vst.msk [vmem:[#allocation2 + $0x10] sm:$0xff] %vm212, %v271
    %280 = vst.msk [vmem:[#allocation2 + $0x18] sm:$0xff] %vm212, %v272
    %281 = vst.msk [vmem:[#allocation2 + $0x20] sm:$0xff] %vm212, %v273
    %282 = vst.msk [vmem:[#allocation2 + $0x28] sm:$0xff] %vm212, %v274
    %283 = vst.msk [vmem:[#allocation2 + $0x30] sm:$0xff] %vm212, %v275
    %284 = vst.msk [vmem:[#allocation2 + $0x38] sm:$0xff] %vm212, %v276
    // Predicated region
    $region22: #{tpu_custom_call.1} parent=1 // pred_check
      %p285 = pneg %p63
    $region23: #{tpu_custom_call.1} parent=1 // pred_check_branch
      %287 = sbr.rel (%p285) target = $region25
    $region24: #{tpu_custom_call.1} parent=1 // pred_region
      %v288 = vld [vmem:[#allocation2] sm:$0xff]
      %v289 = vld [vmem:[#allocation2 + $0x8] sm:$0xff]
      %v290 = vld [vmem:[#allocation2 + $0x10] sm:$0xff]
      %v291 = vld [vmem:[#allocation2 + $0x18] sm:$0xff]
      %v292 = vld [vmem:[#allocation2 + $0x20] sm:$0xff]
      %v293 = vld [vmem:[#allocation2 + $0x28] sm:$0xff]
      %v294 = vld [vmem:[#allocation2 + $0x30] sm:$0xff]
      %v295 = vld [vmem:[#allocation2 + $0x38] sm:$0xff]
      %v296 = vsel %vm212, %v288, 0.0
      %v297 = vsel %vm212, %v289, 0.0
      %v298 = vadd.f32 %v296, %v297
      %v299 = vsel %vm212, %v290, 0.0
      %v300 = vadd.f32 %v298, %v299
      %v301 = vsel %vm212, %v291, 0.0
      %v302 = vadd.f32 %v300, %v301
      %v303 = vsel %vm212, %v292, 0.0
      %v304 = vadd.f32 %v302, %v303
      %v305 = vsel %vm212, %v293, 0.0
      %v306 = vadd.f32 %v304, %v305
      %v307 = vsel %vm212, %v294, 0.0
      %v308 = vadd.f32 %v306, %v307
      %v309 = vsel %vm212, %v295, 0.0
      %v310 = vadd.f32 %v308, %v309
      %v311 = vrot.slane %v310, 4
      %v312 = vadd.f32 %v310, %v311
      %v313 = vrot.slane %v312, 2
      %v314 = vadd.f32 %v312, %v313
      %v315 = vrot.slane %v314, 1
      %v316 = vadd.f32 %v314, %v315
      %vm317 = vcmask 516096
      %318 = vst.msk [vmem:[#allocation8] sm:$0x1] %vm317, %v316
    $region25: #{tpu_custom_call.1} parent=1 // pred_fallthru
      _
    // Predicated region
    $region26: #{tpu_custom_call.1} parent=1 // pred_check
      _
    $region27: #{tpu_custom_call.1} parent=1 // pred_check_branch
      %320 = sbr.rel (0) target = $region29
    $region28: #{tpu_custom_call.1} parent=1 // pred_region
      %s322 = ssub.s32 16, 16
      %323 = vsyncadd [#allocation5], %s322
      %s325 = sshll.u32 [#allocation8], 4
      %s326 = int_to_ptr.vmem [resolvable:$true] %s325
      %328 = dma.vmem_to_hbm [thread:$0]  %s326, 16, %s2, [#allocation5]
    $region29: #{tpu_custom_call.1} parent=1 // pred_fallthru
      _
    // Predicated region
    $region30: #{tpu_custom_call.1} parent=1 // pred_check
      _
    $region31: #{tpu_custom_call.1} parent=1 // pred_check_branch
      %330 = sbr.rel (0) target = $region33
    $region32: #{tpu_custom_call.1} parent=1 // pred_region
      %331 = dma.done [#allocation5], 16
    $region33: #{tpu_custom_call.1} parent=1 // pred_fallthru
      _
    %332 = vsyncpa [#allocation4], 1
    %333 = vsyncpa [#allocation7], 1
    %334 = vsyncpa [#allocation5], 1

</llo_original>
